<compile_context>
chip_gen: v5e
topology: v5e:2x2
jax: 0.10.0
libtpu: 0.0.40
codegen_flags: <defaults>
</compile_context>

<pallas_src>
import jax
import jax.numpy as jnp
from jax.experimental import pallas as pl
from jax.experimental.pallas import tpu as pltpu

PACK = 4  # batch rows packed per lane row; PACK * 64 = 256 = full MXU width


def _round_up(n, m):
    return ((n + m - 1) // m) * m


def _block_diag(w, p):
    """(k, n) -> (p*k, p*n) with w repeated on the diagonal blocks."""
    k, n = w.shape
    eye = jnp.eye(p, dtype=w.dtype)
    return (eye[:, None, :, None] * w[None, :, None, :]).reshape(p * k, p * n)


def mlp_kernel(x_ref, w1_ref, b1_ref, w2_ref, b2_ref, w3t_ref, b3_ref, o_ref):
    # x tile: (TB, PACK*IN) bf16; w1/w2/w3t bf16 block-diag; b1/b2 f32; b3 SMEM.
    x = x_ref[...]

    h1 = jnp.dot(x, w1_ref[...], preferred_element_type=jnp.float32)
    h1 = jnp.maximum(h1 + b1_ref[...], 0.0)                   # (TB, PACK*H) f32

    h2 = jnp.dot(h1.astype(jnp.bfloat16), w2_ref[...],
                 preferred_element_type=jnp.float32)
    h2 = jnp.maximum(h2 + b2_ref[...], 0.0)                   # (TB, PACK*H) f32

    # fc3 (block-diag, transposed): (PACK, PACK*H) . (TB, PACK*H)^T
    # -> (PACK, TB): lane-dense writeback (TB is a multiple of 128).
    out = jax.lax.dot_general(
        w3t_ref[...], h2.astype(jnp.bfloat16),
        dimension_numbers=(((1,), (1,)), ((), ())),
        preferred_element_type=jnp.float32)                   # (PACK, TB)
    out = out + b3_ref[0]

    o_ref[...] = out.reshape(o_ref.shape).astype(o_ref.dtype)


def trend_prediction_forward(x, params, tile_b=4096):
    """x: [B, input_size] float32 -> [B, 1] float32."""
    w1, b1, w2, b2, w3, b3 = params
    B, in_features = x.shape
    hidden = w1.shape[1]
    pack = PACK
    quantum = pack * 128  # keeps TB = tile // pack a multiple of 128

    # Tile: big enough to amortize per-step overhead, rounded to the quantum.
    tile = _round_up(min(int(tile_b), max(B, 1)), quantum)
    # v7x has 2 TensorCores; give the "parallel" axis >= 2 grid steps when
    # there is enough work to shard (cheap no-op on v5e/v6e).
    if B >= 2 * quantum:
        tile = min(tile, _round_up(pl.cdiv(B, 2), quantum))
    num_tiles = pl.cdiv(B, tile)
    b_pad = num_tiles * tile
    tb = tile // pack

    x_p = x if b_pad == B else jnp.pad(x, ((0, b_pad - B), (0, 0)))
    # Pack `pack` rows per lane row: (b_pad, IN) -> (b_pad/pack, pack*IN) bf16.
    x_packed = x_p.reshape(b_pad // pack, pack * in_features).astype(jnp.bfloat16)

    # Block-diagonal packed weights (built once per call; resident in VMEM).
    w1_bd = _block_diag(w1.astype(jnp.float32), pack).astype(jnp.bfloat16)
    w2_bd = _block_diag(w2.astype(jnp.float32), pack).astype(jnp.bfloat16)
    w3t_bd = _block_diag(w3.reshape(hidden, 1).T.astype(jnp.float32),
                         pack).astype(jnp.bfloat16)            # (pack, pack*H)
    b1_bd = jnp.tile(b1.reshape(1, hidden).astype(jnp.float32), (1, pack))
    b2_bd = jnp.tile(b2.reshape(1, hidden).astype(jnp.float32), (1, pack))
    b3_s = b3.reshape(1).astype(jnp.float32)                   # scalar -> SMEM

    nbytes = lambda a: int(a.size) * a.dtype.itemsize
    cost = pl.CostEstimate(
        flops=2 * b_pad * pack * (in_features * hidden + hidden * hidden + hidden),
        transcendentals=0,
        bytes_accessed=(nbytes(x_packed) + b_pad * 4 + nbytes(w1_bd)
                        + nbytes(w2_bd) + nbytes(w3t_bd) + nbytes(b1_bd)
                        + nbytes(b2_bd) + nbytes(b3_s)),
    )

    out = pl.pallas_call(
        mlp_kernel,
        out_shape=jax.ShapeDtypeStruct((num_tiles, pack, tb), jnp.float32),
        grid=(num_tiles,),
        in_specs=[
            pl.BlockSpec((tb, pack * in_features), lambda i: (i, 0)),       # x
            pl.BlockSpec((pack * in_features, pack * hidden),
                         lambda i: (0, 0)),                                  # w1_bd
            pl.BlockSpec((1, pack * hidden), lambda i: (0, 0)),              # b1
            pl.BlockSpec((pack * hidden, pack * hidden), lambda i: (0, 0)),  # w2_bd
            pl.BlockSpec((1, pack * hidden), lambda i: (0, 0)),              # b2
            pl.BlockSpec((pack, pack * hidden), lambda i: (0, 0)),           # w3t_bd
            pl.BlockSpec(memory_space=pltpu.MemorySpace.SMEM),               # b3
        ],
        out_specs=pl.BlockSpec((1, pack, tb), lambda i: (i, 0, 0)),
        compiler_params=pltpu.CompilerParams(
            dimension_semantics=("parallel",)),
        cost_estimate=cost,
    )(x_packed, w1_bd, b1_bd, w2_bd, b2_bd, w3t_bd, b3_s)

    # (num_tiles, pack, tb) -> un-interleave -> (b_pad, 1) -> drop padding.
    return out.transpose(0, 2, 1).reshape(b_pad, 1)[:B]


def init_params(key, input_size, hidden=64):
    """Deterministic init mimicking nn.Linear's U(-1/sqrt(fan_in), 1/sqrt(fan_in))."""
    ks = jax.random.split(key, 6)

    def lin(kw, kb, fan_in, fan_out):
        bound = 1.0 / jnp.sqrt(jnp.float32(fan_in))
        w = jax.random.uniform(kw, (fan_in, fan_out), jnp.float32, -bound, bound)
        b = jax.random.uniform(kb, (1, fan_out), jnp.float32, -bound, bound)
        return w, b

    w1, b1 = lin(ks[0], ks[1], input_size, hidden)
    w2, b2 = lin(ks[2], ks[3], hidden, hidden)
    w3, b3 = lin(ks[4], ks[5], hidden, 1)
    return (w1, b1, w2, b2, w3, b3)


def reference_forward(x, params):
    # Matches the kernel's numerics: bf16 operands, f32 accumulation.
    w1, b1, w2, b2, w3, b3 = params
    bf = jnp.bfloat16
    h1 = jnp.maximum(
        jnp.dot(x.astype(bf), w1.astype(bf),
                preferred_element_type=jnp.float32) + b1.reshape(1, -1), 0.0)
    h2 = jnp.maximum(
        jnp.dot(h1.astype(bf), w2.astype(bf),
                preferred_element_type=jnp.float32) + b2.reshape(1, -1), 0.0)
    return jnp.dot(h2.astype(bf), w3.astype(bf),
                   preferred_element_type=jnp.float32) + b3.reshape(1, -1)


if __name__ == "__main__":
    key = jax.random.PRNGKey(0)
    k_x, k_p, k_x2 = jax.random.split(key, 3)

    input_size = 32  # stand-in for train_data.shape[1]
    params = init_params(k_p, input_size)

    # Small batch: exercises row padding of a single partial tile.
    batch = 8
    x = jax.random.normal(k_x, (batch, input_size), dtype=jnp.float32)
    # Standardize (zero mean / unit variance), mirroring preprocess_data.
    x = (x - x.mean(axis=0, keepdims=True)) / (x.std(axis=0, keepdims=True) + 1e-8)

    out = jax.block_until_ready(trend_prediction_forward(x, params))
    ref = reference_forward(x, params)
    assert out.shape == (batch, 1), out.shape
    assert jnp.allclose(out, ref, atol=2e-3, rtol=2e-3), "mismatch (small batch)"

    # Multi-tile grid + ragged tail: 1100 rows -> 2 grid steps (v7x 2-TC path).
    batch2 = 1100
    x2 = jax.random.normal(k_x2, (batch2, input_size), dtype=jnp.float32)
    out2 = jax.block_until_ready(trend_prediction_forward(x2, params))
    ref2 = reference_forward(x2, params)
    assert out2.shape == (batch2, 1), out2.shape
    assert jnp.allclose(out2, ref2, atol=2e-3, rtol=2e-3), "mismatch (multi-tile)"

    print("KERNEL_OK")
</pallas_src>

<mosaic_0001>
module attributes {stable_mosaic.version = 11 : i64} {
  func.func @mlp_kernel(%arg0: i32, %arg1: memref<128x128xbf16, #tpu.memory_space<vmem>>, %arg2: memref<128x256xbf16, #tpu.memory_space<vmem>>, %arg3: memref<1x256xf32, #tpu.memory_space<vmem>>, %arg4: memref<256x256xbf16, #tpu.memory_space<vmem>>, %arg5: memref<1x256xf32, #tpu.memory_space<vmem>>, %arg6: memref<4x256xbf16, #tpu.memory_space<vmem>>, %arg7: memref<1xf32, #tpu.memory_space<smem>>, %arg8: memref<1x4x128xf32, #tpu.memory_space<vmem>>) attributes {dimension_semantics = [#tpu.dimension_semantics<parallel>], iteration_bounds = array<i64: 1>, scalar_prefetch = 0 : i64, scratch_operands = 0 : i64, tpu.core_type = #tpu.core_type<tc>, window_params = [{transform_indices = @transform_0, window_bounds = array<i64: 128, 128>}, {pipeline_mode = #tpu.pipeline_mode<synchronous>, transform_indices = @transform_1, window_bounds = array<i64: 128, 256>}, {pipeline_mode = #tpu.pipeline_mode<synchronous>, transform_indices = @transform_2, window_bounds = array<i64: 1, 256>}, {pipeline_mode = #tpu.pipeline_mode<synchronous>, transform_indices = @transform_3, window_bounds = array<i64: 256, 256>}, {pipeline_mode = #tpu.pipeline_mode<synchronous>, transform_indices = @transform_4, window_bounds = array<i64: 1, 256>}, {pipeline_mode = #tpu.pipeline_mode<synchronous>, transform_indices = @transform_5, window_bounds = array<i64: 4, 256>}, {transform_indices = @transform_6, window_bounds = array<i64: 1>}, {transform_indices = @transform_7, window_bounds = array<i64: 1, 4, 128>}]} {
    %c0 = arith.constant 0 : index
    %c0_0 = arith.constant 0 : index
    %0 = vector.load %arg1[%c0, %c0_0] : memref<128x128xbf16, #tpu.memory_space<vmem>>, vector<128x128xbf16>
    %c0_1 = arith.constant 0 : index
    %c0_2 = arith.constant 0 : index
    %1 = vector.load %arg2[%c0_1, %c0_2] : memref<128x256xbf16, #tpu.memory_space<vmem>>, vector<128x256xbf16>
    %cst = arith.constant dense<0.000000e+00> : vector<128x256xf32>
    %2 = tpu.matmul %0, %1, %cst {dimension_numbers = #tpu.dot_dimension_numbers<[1], [0], [0], [1], [0, 0, 1, 1], [], []>} : vector<128x128xbf16>, vector<128x256xbf16>, vector<128x256xf32> -> vector<128x256xf32>
    %c0_3 = arith.constant 0 : index
    %c0_4 = arith.constant 0 : index
    %3 = vector.load %arg3[%c0_3, %c0_4] : memref<1x256xf32, #tpu.memory_space<vmem>>, vector<1x256xf32>
    %4 = vector.broadcast %3 : vector<1x256xf32> to vector<128x256xf32>
    %5 = arith.addf %2, %4 : vector<128x256xf32>
    %cst_5 = arith.constant 0.000000e+00 : f32
    %6 = vector.broadcast %cst_5 : f32 to vector<128x256xf32>
    %7 = arith.maximumf %5, %6 : vector<128x256xf32>
    %8 = arith.truncf %7 : vector<128x256xf32> to vector<128x256xbf16>
    %c0_6 = arith.constant 0 : index
    %c0_7 = arith.constant 0 : index
    %9 = vector.load %arg4[%c0_6, %c0_7] : memref<256x256xbf16, #tpu.memory_space<vmem>>, vector<256x256xbf16>
    %cst_8 = arith.constant dense<0.000000e+00> : vector<128x256xf32>
    %10 = tpu.matmul %8, %9, %cst_8 {dimension_numbers = #tpu.dot_dimension_numbers<[1], [0], [0], [1], [0, 0, 1, 1], [], []>} : vector<128x256xbf16>, vector<256x256xbf16>, vector<128x256xf32> -> vector<128x256xf32>
    %c0_9 = arith.constant 0 : index
    %c0_10 = arith.constant 0 : index
    %11 = vector.load %arg5[%c0_9, %c0_10] : memref<1x256xf32, #tpu.memory_space<vmem>>, vector<1x256xf32>
    %12 = vector.broadcast %11 : vector<1x256xf32> to vector<128x256xf32>
    %13 = arith.addf %10, %12 : vector<128x256xf32>
    %cst_11 = arith.constant 0.000000e+00 : f32
    %14 = vector.broadcast %cst_11 : f32 to vector<128x256xf32>
    %15 = arith.maximumf %13, %14 : vector<128x256xf32>
    %c0_12 = arith.constant 0 : index
    %c0_13 = arith.constant 0 : index
    %16 = vector.load %arg6[%c0_12, %c0_13] : memref<4x256xbf16, #tpu.memory_space<vmem>>, vector<4x256xbf16>
    %17 = arith.truncf %15 : vector<128x256xf32> to vector<128x256xbf16>
    %cst_14 = arith.constant dense<0.000000e+00> : vector<4x128xf32>
    %18 = tpu.matmul %16, %17, %cst_14 {dimension_numbers = #tpu.dot_dimension_numbers<[1], [1], [0], [0], [0, 0, 1, 0], [], []>} : vector<4x256xbf16>, vector<128x256xbf16>, vector<4x128xf32> -> vector<4x128xf32>
    %c0_15 = arith.constant 0 : index
    %19 = memref.load %arg7[%c0_15] : memref<1xf32, #tpu.memory_space<smem>>
    %20 = vector.broadcast %19 : f32 to vector<4x128xf32>
    %21 = arith.addf %18, %20 : vector<4x128xf32>
    %22 = vector.shape_cast %21 : vector<4x128xf32> to vector<1x4x128xf32>
    %c0_16 = arith.constant 0 : index
    %c0_17 = arith.constant 0 : index
    %c0_18 = arith.constant 0 : index
    %23 = vector.load %arg8[%c0_16, %c0_17, %c0_18] : memref<1x4x128xf32, #tpu.memory_space<vmem>>, vector<1x4x128xf32>
    tpu.vector_store %arg8[%c0_16, %c0_17, %c0_18], %22 {strides = array<i32>} : memref<1x4x128xf32, #tpu.memory_space<vmem>>, vector<1x4x128xf32>,
    return
  }
  func.func @transform_0(%arg0: i32) -> (i32, i32) {
    %c0_i32 = arith.constant 0 : i32
    %c0_i32_0 = arith.constant 0 : i32
    return %arg0, %c0_i32 : i32, i32
  }
  func.func @transform_1(%arg0: i32) -> (i32, i32) {
    %c0_i32 = arith.constant 0 : i32
    %c0_i32_0 = arith.constant 0 : i32
    %c0_i32_1 = arith.constant 0 : i32
    return %c0_i32, %c0_i32_0 : i32, i32
  }
  func.func @transform_2(%arg0: i32) -> (i32, i32) {
    %c0_i32 = arith.constant 0 : i32
    %c0_i32_0 = arith.constant 0 : i32
    %c0_i32_1 = arith.constant 0 : i32
    return %c0_i32, %c0_i32_0 : i32, i32
  }
  func.func @transform_3(%arg0: i32) -> (i32, i32) {
    %c0_i32 = arith.constant 0 : i32
    %c0_i32_0 = arith.constant 0 : i32
    %c0_i32_1 = arith.constant 0 : i32
    return %c0_i32, %c0_i32_0 : i32, i32
  }
  func.func @transform_4(%arg0: i32) -> (i32, i32) {
    %c0_i32 = arith.constant 0 : i32
    %c0_i32_0 = arith.constant 0 : i32
    %c0_i32_1 = arith.constant 0 : i32
    return %c0_i32, %c0_i32_0 : i32, i32
  }
  func.func @transform_5(%arg0: i32) -> (i32, i32) {
    %c0_i32 = arith.constant 0 : i32
    %c0_i32_0 = arith.constant 0 : i32
    %c0_i32_1 = arith.constant 0 : i32
    return %c0_i32, %c0_i32_0 : i32, i32
  }
  func.func @transform_6(%arg0: i32) -> i32 {
    %c0_i32 = arith.constant 0 : i32
    %c0_i32_0 = arith.constant 0 : i32
    return %c0_i32 : i32
  }
  func.func @transform_7(%arg0: i32) -> (i32, i32, i32) {
    %c0_i32 = arith.constant 0 : i32
    %c0_i32_0 = arith.constant 0 : i32
    %c0_i32_1 = arith.constant 0 : i32
    return %arg0, %c0_i32, %c0_i32_0 : i32, i32, i32
  }
}

</mosaic_0001>

<llo_original>
// kernel: tpu_custom_call.1
$region0: #{tpu_custom_call.1}
  #allocation0 [shape = 'u32[]', space=smem, size = 0x4, offset = 0x4, fixed_abs, tag = 'smem constant byte address 0x4 - core index']
  #allocation1 [shape = 'u32[72,128]{1,0:T(1,128)}', space=vmem, size = 0x9000, scoped, tag = 'internal scratch']
  #allocation2 [shape = 'f32[1]{0:T(128)S(6)}', space=smem, size = 0x200, scoped, tag = 'scoped memory for tpu_custom_call.1']
  %s0 = inlined_call_operand.hbm [shape: bf16[128,128], index: 0, kind: input, shape index: {}]
  %s1 = inlined_call_operand.hbm [shape: bf16[128,256], index: 1, kind: input, shape index: {}]
  %s2 = inlined_call_operand.vmem [shape: f32[1,256], index: 2, kind: input, shape index: {}]
  %s3 = inlined_call_operand.hbm [shape: bf16[256,256], index: 3, kind: input, shape index: {}]
  %s4 = inlined_call_operand.hbm [shape: f32[1,256], index: 4, kind: input, shape index: {}]
  %s5 = inlined_call_operand.vmem [shape: bf16[4,256], index: 5, kind: input, shape index: {}]
  %s6 = inlined_call_operand.<no memory space> [shape: f32[1], index: 6, kind: input, shape index: {}]
  %s7 = inlined_call_operand.hbm [shape: f32[1,4,128], index: 7, kind: output, shape index: {}]
  %s8 = sld [smem:[#allocation0]]
  $region54: #{tpu_custom_call.1} parent=0
    _
  %s10 = ssub.s32 1, %s8
  %s11 = scalar_select 0, %s10, %s8
  %12 = sst [smem:[#allocation2]] %s6
  $region1: #{tpu_custom_call.1} parent=0
    #allocation3 [shape = 'u8[32768]{0}', space=vmem, size = 0x8000, scoped, tag = 'input window, operand 0, single buffered']
    #allocation4 [shape = 's32[1]{0}', space=sflag, size = 0x4, scoped, tag = 'scoped memory for tpu_custom_call.1']
    #allocation5 [shape = 's32[1]{0}', space=sflag, size = 0x4, scoped, tag = 'scoped memory for tpu_custom_call.1']
    #allocation6 [shape = 'u8[65536]{0}', space=vmem, size = 0x10000, scoped, tag = 'input window, operand 1, single buffered']
    #allocation7 [shape = 's32[1]{0}', space=sflag, size = 0x4, scoped, tag = 'scoped memory for tpu_custom_call.1']
    #allocation8 [shape = 'u8[131072]{0}', space=vmem, size = 0x20000, scoped, tag = 'input window, operand 3, single buffered']
    #allocation9 [shape = 'u8[1024]{0}', space=vmem, size = 0x400, scoped, tag = 'input window, operand 4, single buffered']
    #allocation10 [shape = 's32[1]{0}', space=sflag, size = 0x4, scoped, tag = 'scoped memory for tpu_custom_call.1']
    #allocation11 [shape = 'u8[2048]{0}', space=vmem, size = 0x800, scoped, tag = 'output window, operand 0, single buffered']
    %13 = vsyncpa [#allocation4], 0
    %14 = vsyncpa [#allocation7], 0
    %15 = vsyncpa [#allocation10], 0
    %16 = vsyncpa [#allocation5], 0
    // Predicated region
    $region2: #{tpu_custom_call.1} parent=1 // pred_check
      _
    $region3: #{tpu_custom_call.1} parent=1 // pred_check_branch
      %18 = sbr.rel (0) target = $region5
    $region4: #{tpu_custom_call.1} parent=1 // pred_region
      %20 = vsyncadd [#allocation4], 0
      %s21 = sshll.u32 %s0, 4
      %s22 = int_to_ptr.hbm [resolvable:$true] %s21
      %s23 = sshll.u32 [#allocation3], 4
      %s24 = int_to_ptr.vmem [resolvable:$true] %s23
      %29 = dma.hbm_to_vmem [thread:$0]  %s22, 1024, %s24, [#allocation4], 64, 64, 4
    $region5: #{tpu_custom_call.1} parent=1 // pred_fallthru
      _
    // Predicated region
    $region6: #{tpu_custom_call.1} parent=1 // pred_check
      _
    $region7: #{tpu_custom_call.1} parent=1 // pred_check_branch
      %31 = sbr.rel (0) target = $region9
    $region8: #{tpu_custom_call.1} parent=1 // pred_region
      %33 = vsyncadd [#allocation7], 0
      %s34 = sshll.u32 %s1, 4
      %s35 = int_to_ptr.hbm [resolvable:$true] %s34
      %s36 = sshll.u32 [#allocation6], 4
      %s37 = int_to_ptr.vmem [resolvable:$true] %s36
      %42 = dma.hbm_to_vmem [thread:$0]  %s35, 2048, %s37, [#allocation7], 128, 128, 8
    $region9: #{tpu_custom_call.1} parent=1 // pred_fallthru
      _
    // Predicated region
    $region10: #{tpu_custom_call.1} parent=1 // pred_check
      _
    $region11: #{tpu_custom_call.1} parent=1 // pred_check_branch
      %44 = sbr.rel (0) target = $region13
    $region12: #{tpu_custom_call.1} parent=1 // pred_region
      _
    $region13: #{tpu_custom_call.1} parent=1 // pred_fallthru
      _
    // Predicated region
    $region14: #{tpu_custom_call.1} parent=1 // pred_check
      _
    $region15: #{tpu_custom_call.1} parent=1 // pred_check_branch
      %46 = sbr.rel (0) target = $region17
    $region16: #{tpu_custom_call.1} parent=1 // pred_region
      %48 = vsyncadd [#allocation7], 0
      %s49 = sshll.u32 %s3, 4
      %s50 = int_to_ptr.hbm [resolvable:$true] %s49
      %s51 = sshll.u32 [#allocation8], 4
      %s52 = int_to_ptr.vmem [resolvable:$true] %s51
      %57 = dma.hbm_to_vmem [thread:$0]  %s50, 4096, %s52, [#allocation7], 128, 128, 8
    $region17: #{tpu_custom_call.1} parent=1 // pred_fallthru
      _
    // Predicated region
    $region18: #{tpu_custom_call.1} parent=1 // pred_check
      _
    $region19: #{tpu_custom_call.1} parent=1 // pred_check_branch
      %59 = sbr.rel (0) target = $region21
    $region20: #{tpu_custom_call.1} parent=1 // pred_region
      %61 = vsyncadd [#allocation10], 0
      %s63 = sshll.u32 %s4, 4
      %s64 = int_to_ptr.hbm [resolvable:$true] %s63
      %s65 = sshll.u32 [#allocation9], 4
      %s66 = int_to_ptr.vmem [resolvable:$true] %s65
      %68 = dma.hbm_to_vmem [thread:$0]  %s64, 32, %s66, [#allocation10]
    $region21: #{tpu_custom_call.1} parent=1 // pred_fallthru
      _
    // Predicated region
    $region22: #{tpu_custom_call.1} parent=1 // pred_check
      _
    $region23: #{tpu_custom_call.1} parent=1 // pred_check_branch
      %70 = sbr.rel (0) target = $region25
    $region24: #{tpu_custom_call.1} parent=1 // pred_region
      _
    $region25: #{tpu_custom_call.1} parent=1 // pred_fallthru
      _
    // Predicated region
    $region26: #{tpu_custom_call.1} parent=1 // pred_check
      _
    $region27: #{tpu_custom_call.1} parent=1 // pred_check_branch
      %72 = sbr.rel (0) target = $region29
    $region28: #{tpu_custom_call.1} parent=1 // pred_region
      _
    $region29: #{tpu_custom_call.1} parent=1 // pred_fallthru
      _
    // Predicated region
    $region30: #{tpu_custom_call.1} parent=1 // pred_check
      _
    $region31: #{tpu_custom_call.1} parent=1 // pred_check_branch
      %74 = sbr.rel (0) target = $region33
    $region32: #{tpu_custom_call.1} parent=1 // pred_region
      %76 = dma.done [#allocation4], 1024
    $region33: #{tpu_custom_call.1} parent=1 // pred_fallthru
      _
    // Predicated region
    $region34: #{tpu_custom_call.1} parent=1 // pred_check
      _
    $region35: #{tpu_custom_call.1} parent=1 // pred_check_branch
      %78 = sbr.rel (0) target = $region37
    $region36: #{tpu_custom_call.1} parent=1 // pred_region
      %80 = dma.done [#allocation7], 2048
    $region37: #{tpu_custom_call.1} parent=1 // pred_fallthru
      _
    // Predicated region
    $region38: #{tpu_custom_call.1} parent=1 // pred_check
      _
    $region39: #{tpu_custom_call.1} parent=1 // pred_check_branch
      %82 = sbr.rel (0) target = $region41
    $region40: #{tpu_custom_call.1} parent=1 // pred_region
      %84 = dma.done [#allocation7], 4096
    $region41: #{tpu_custom_call.1} parent=1 // pred_fallthru
      _
    // Predicated region
    $region42: #{tpu_custom_call.1} parent=1 // pred_check
      _
    $region43: #{tpu_custom_call.1} parent=1 // pred_check_branch
      %86 = sbr.rel (0) target = $region45
    $region44: #{tpu_custom_call.1} parent=1 // pred_region
      %88 = dma.done [#allocation10], 32
    $region45: #{tpu_custom_call.1} parent=1 // pred_fallthru
      _
    %v89 = vld [vmem:[#allocation3] sm:$0xf]
    %v90 = vld [vmem:[#allocation3 + $0x4] sm:$0xf]
    %v91 = vld [vmem:[#allocation3 + $0x8] sm:$0xf]
    %v92 = vld [vmem:[#allocation3 + $0xc] sm:$0xf]
    %v93 = vld [vmem:[#allocation3 + $0x10] sm:$0xf]
    %v94 = vld [vmem:[#allocation3 + $0x14] sm:$0xf]
    %v95 = vld [vmem:[#allocation3 + $0x18] sm:$0xf]
    %v96 = vld [vmem:[#allocation3 + $0x1c] sm:$0xf]
    %v97 = vld [vmem:[#allocation3 + $0x20] sm:$0xf]
    %v98 = vld [vmem:[#allocation3 + $0x24] sm:$0xf]
    %v99 = vld [vmem:[#allocation3 + $0x28] sm:$0xf]
    %v100 = vld [vmem:[#allocation3 + $0x2c] sm:$0xf]
    %v101 = vld [vmem:[#allocation3 + $0x30] sm:$0xf]
    %v102 = vld [vmem:[#allocation3 + $0x34] sm:$0xf]
    %v103 = vld [vmem:[#allocation3 + $0x38] sm:$0xf]
    %v104 = vld [vmem:[#allocation3 + $0x3c] sm:$0xf]
    %v105 = vld [vmem:[#allocation6] sm:$0xff]
    %v106 = vld [vmem:[#allocation6 + $0x8] sm:$0xff]
    %v107 = vld [vmem:[#allocation6 + $0x10] sm:$0xff]
    %v108 = vld [vmem:[#allocation6 + $0x18] sm:$0xff]
    %v109 = vld [vmem:[#allocation6 + $0x20] sm:$0xff]
    %v110 = vld [vmem:[#allocation6 + $0x28] sm:$0xff]
    %v111 = vld [vmem:[#allocation6 + $0x30] sm:$0xff]
    %v112 = vld [vmem:[#allocation6 + $0x38] sm:$0xff]
    %v113 = vld [vmem:[#allocation6 + $0x40] sm:$0xff]
    %v114 = vld [vmem:[#allocation6 + $0x48] sm:$0xff]
    %v115 = vld [vmem:[#allocation6 + $0x50] sm:$0xff]
    %v116 = vld [vmem:[#allocation6 + $0x58] sm:$0xff]
    %v117 = vld [vmem:[#allocation6 + $0x60] sm:$0xff]
    %v118 = vld [vmem:[#allocation6 + $0x68] sm:$0xff]
    %v119 = vld [vmem:[#allocation6 + $0x70] sm:$0xff]
    %v120 = vld [vmem:[#allocation6 + $0x78] sm:$0xff]
    %v121 = vld [vmem:[%s2] sm:$0x3]
    %v123 = vperm.slane %v121, 0
    %v124 = vperm.slane %v121, 1
    %v143 = vunpack.c.l.b16 %v89
    %v144 = vunpack.c.l.b16 %v90
    %v145 = vunpack.c.l.b16 %v91
    %v146 = vunpack.c.l.b16 %v92
    %v147 = vunpack.c.l.b16 %v93
    %v148 = vunpack.c.l.b16 %v94
    %v149 = vunpack.c.l.b16 %v95
    %v150 = vunpack.c.l.b16 %v96
    %v151 = vunpack.c.l.b16 %v97
    %v152 = vunpack.c.l.b16 %v98
    %v153 = vunpack.c.l.b16 %v99
    %v154 = vunpack.c.l.b16 %v100
    %v155 = vunpack.c.l.b16 %v101
    %v156 = vunpack.c.l.b16 %v102
    %v157 = vunpack.c.l.b16 %v103
    %v158 = vunpack.c.l.b16 %v104
    %v159 = vpack.c.b16 %v144, %v143
    %v160 = vpack.c.b16 %v146, %v145
    %v161 = vpack.c.b16 %v148, %v147
    %v162 = vpack.c.b16 %v150, %v149
    %v163 = vpack.c.b16 %v152, %v151
    %v164 = vpack.c.b16 %v154, %v153
    %v165 = vpack.c.b16 %v156, %v155
    %v166 = vpack.c.b16 %v158, %v157
    %v191 = vunpack.c.l.b16 %v105
    %v192 = vunpack.c.h.b16 %v105
    %v193 = vunpack.c.l.b16 %v106
    %v194 = vunpack.c.h.b16 %v106
    %v195 = vunpack.c.l.b16 %v107
    %v196 = vunpack.c.h.b16 %v107
    %v197 = vunpack.c.l.b16 %v108
    %v198 = vunpack.c.h.b16 %v108
    %v199 = vunpack.c.l.b16 %v109
    %v200 = vunpack.c.h.b16 %v109
    %v201 = vunpack.c.l.b16 %v110
    %v202 = vunpack.c.h.b16 %v110
    %v203 = vunpack.c.l.b16 %v111
    %v204 = vunpack.c.h.b16 %v111
    %v205 = vunpack.c.l.b16 %v112
    %v206 = vunpack.c.h.b16 %v112
    %v207 = vunpack.c.l.b16 %v113
    %v208 = vunpack.c.h.b16 %v113
    %v209 = vunpack.c.l.b16 %v114
    %v210 = vunpack.c.h.b16 %v114
    %v211 = vunpack.c.l.b16 %v115
    %v212 = vunpack.c.h.b16 %v115
    %v213 = vunpack.c.l.b16 %v116
    %v214 = vunpack.c.h.b16 %v116
    %v215 = vunpack.c.l.b16 %v117
    %v216 = vunpack.c.h.b16 %v117
    %v217 = vunpack.c.l.b16 %v118
    %v218 = vunpack.c.h.b16 %v118
    %v219 = vunpack.c.l.b16 %v119
    %v220 = vunpack.c.h.b16 %v119
    %v221 = vunpack.c.l.b16 %v120
    %v222 = vunpack.c.h.b16 %v120
    %v223 = vpack.c.b16 %v193, %v191
    %v224 = vpack.c.b16 %v194, %v192
    %v225 = vpack.c.b16 %v197, %v195
    %v226 = vpack.c.b16 %v198, %v196
    %v227 = vpack.c.b16 %v201, %v199
    %v228 = vpack.c.b16 %v202, %v200
    %v229 = vpack.c.b16 %v205, %v203
    %v230 = vpack.c.b16 %v206, %v204
    %v231 = vpack.c.b16 %v209, %v207
    %v232 = vpack.c.b16 %v210, %v208
    %v233 = vpack.c.b16 %v213, %v211
    %v234 = vpack.c.b16 %v214, %v212
    %v235 = vpack.c.b16 %v217, %v215
    %v236 = vpack.c.b16 %v218, %v216
    %v237 = vpack.c.b16 %v221, %v219
    %v238 = vpack.c.b16 %v222, %v220
    %255 = vmatpush.bf16.msra.mxu0 %v237
    %256 = vmatpush.bf16.msra.mxu0 %v235
    %257 = vmatpush.bf16.msra.mxu0 %v233
    %258 = vmatpush.bf16.msra.mxu0 %v231
    %259 = vmatpush.bf16.msra.mxu0 %v229
    %260 = vmatpush.bf16.msra.mxu0 %v227
    %261 = vmatpush.bf16.msra.mxu0 %v225
    %262 = vmatpush.bf16.msra.mxu0 %v223
    %263 = vmatmul.bf16.gmra.mxu0 %v159
    %v264 = vpop.f32.mrf.mxu0
    %v265 = vadd.f32 %v123, %v264
    %v266 = vpop.f32.mrf.mxu0
    %v267 = vadd.f32 %v123, %v266
    %268 = vmatmul.bf16.gmra.mxu0 %v160
    %v269 = vpop.f32.mrf.mxu0
    %v270 = vadd.f32 %v123, %v269
    %v271 = vpop.f32.mrf.mxu0
    %v272 = vadd.f32 %v123, %v271
    %273 = vmatmul.bf16.gmra.mxu0 %v161
    %v274 = vpop.f32.mrf.mxu0
    %v275 = vadd.f32 %v123, %v274
    %v276 = vpop.f32.mrf.mxu0
    %v277 = vadd.f32 %v123, %v276
    %278 = vmatmul.bf16.gmra.mxu0 %v162
    %v279 = vpop.f32.mrf.mxu0
    %v280 = vadd.f32 %v123, %v279
    %v281 = vpop.f32.mrf.mxu0
    %v282 = vadd.f32 %v123, %v281
    %283 = vmatmul.bf16.gmra.mxu0 %v163
    %v284 = vpop.f32.mrf.mxu0
    %v285 = vadd.f32 %v123, %v284
    %v286 = vpop.f32.mrf.mxu0
    %v287 = vadd.f32 %v123, %v286
    %288 = vmatmul.bf16.gmra.mxu0 %v164
    %v289 = vpop.f32.mrf.mxu0
    %v290 = vadd.f32 %v123, %v289
    %v291 = vpop.f32.mrf.mxu0
    %v292 = vadd.f32 %v123, %v291
    %293 = vmatmul.bf16.gmra.mxu0 %v165
    %v294 = vpop.f32.mrf.mxu0
    %v295 = vadd.f32 %v123, %v294
    %v296 = vpop.f32.mrf.mxu0
    %v297 = vadd.f32 %v123, %v296
    %298 = vmatmul.bf16.gmra.mxu0 %v166
    %v299 = vpop.f32.mrf.mxu0
    %v300 = vadd.f32 %v123, %v299
    %v301 = vpop.f32.mrf.mxu0
    %v302 = vadd.f32 %v123, %v301
    %303 = vdwg.mxu0
    %304 = vmatpush.bf16.msra.mxu0 %v238
    %305 = vmatpush.bf16.msra.mxu0 %v236
    %306 = vmatpush.bf16.msra.mxu0 %v234
    %307 = vmatpush.bf16.msra.mxu0 %v232
    %308 = vmatpush.bf16.msra.mxu0 %v230
    %309 = vmatpush.bf16.msra.mxu0 %v228
    %310 = vmatpush.bf16.msra.mxu0 %v226
    %311 = vmatpush.bf16.msra.mxu0 %v224
    %312 = vmatmul.bf16.gmra.mxu0 %v159
    %v313 = vpop.f32.mrf.mxu0
    %v314 = vadd.f32 %v124, %v313
    %v315 = vpop.f32.mrf.mxu0
    %v316 = vadd.f32 %v124, %v315
    %317 = vmatmul.bf16.gmra.mxu0 %v160
    %v318 = vpop.f32.mrf.mxu0
    %v319 = vadd.f32 %v124, %v318
    %v320 = vpop.f32.mrf.mxu0
    %v321 = vadd.f32 %v124, %v320
    %322 = vmatmul.bf16.gmra.mxu0 %v161
    %v323 = vpop.f32.mrf.mxu0
    %v324 = vadd.f32 %v124, %v323
    %v325 = vpop.f32.mrf.mxu0
    %v326 = vadd.f32 %v124, %v325
    %327 = vmatmul.bf16.gmra.mxu0 %v162
    %v328 = vpop.f32.mrf.mxu0
    %v329 = vadd.f32 %v124, %v328
    %v330 = vpop.f32.mrf.mxu0
    %v331 = vadd.f32 %v124, %v330
    %332 = vmatmul.bf16.gmra.mxu0 %v163
    %v333 = vpop.f32.mrf.mxu0
    %v334 = vadd.f32 %v124, %v333
    %v335 = vpop.f32.mrf.mxu0
    %v336 = vadd.f32 %v124, %v335
    %337 = vmatmul.bf16.gmra.mxu0 %v164
    %v338 = vpop.f32.mrf.mxu0
    %v339 = vadd.f32 %v124, %v338
    %v340 = vpop.f32.mrf.mxu0
    %v341 = vadd.f32 %v124, %v340
    %342 = vmatmul.bf16.gmra.mxu0 %v165
    %v343 = vpop.f32.mrf.mxu0
    %v344 = vadd.f32 %v124, %v343
    %v345 = vpop.f32.mrf.mxu0
    %v346 = vadd.f32 %v124, %v345
    %347 = vmatmul.bf16.gmra.mxu0 %v166
    %v348 = vpop.f32.mrf.mxu0
    %v349 = vadd.f32 %v124, %v348
    %v350 = vpop.f32.mrf.mxu0
    %v351 = vadd.f32 %v124, %v350
    %352 = vdwg.mxu0
    %v353 = vmax.f32 %v265, 0.0
    %v354 = vmax.f32 %v314, 0.0
    %v355 = vmax.f32 %v267, 0.0
    %v356 = vmax.f32 %v316, 0.0
    %v357 = vmax.f32 %v270, 0.0
    %v358 = vmax.f32 %v319, 0.0
    %v359 = vmax.f32 %v272, 0.0
    %v360 = vmax.f32 %v321, 0.0
    %v361 = vmax.f32 %v275, 0.0
    %v362 = vmax.f32 %v324, 0.0
    %v363 = vmax.f32 %v277, 0.0
    %v364 = vmax.f32 %v326, 0.0
    %v365 = vmax.f32 %v280, 0.0
    %v366 = vmax.f32 %v329, 0.0
    %v367 = vmax.f32 %v282, 0.0
    %v368 = vmax.f32 %v331, 0.0
    %v369 = vmax.f32 %v285, 0.0
    %v370 = vmax.f32 %v334, 0.0
    %v371 = vmax.f32 %v287, 0.0
    %v372 = vmax.f32 %v336, 0.0
    %v373 = vmax.f32 %v290, 0.0
    %v374 = vmax.f32 %v339, 0.0
    %v375 = vmax.f32 %v292, 0.0
    %v376 = vmax.f32 %v341, 0.0
    %v377 = vmax.f32 %v295, 0.0
    %v378 = vmax.f32 %v344, 0.0
    %v379 = vmax.f32 %v297, 0.0
    %v380 = vmax.f32 %v346, 0.0
    %v381 = vmax.f32 %v300, 0.0
    %v382 = vmax.f32 %v349, 0.0
    %v383 = vmax.f32 %v302, 0.0
    %v384 = vmax.f32 %v351, 0.0
    %v385 = vpack.c.bf16 %v355, %v353
    %v386 = vpack.c.bf16 %v356, %v354
    %v387 = vpack.c.bf16 %v359, %v357
    %v388 = vpack.c.bf16 %v360, %v358
    %v389 = vpack.c.bf16 %v363, %v361
    %v390 = vpack.c.bf16 %v364, %v362
    %v391 = vpack.c.bf16 %v367, %v365
    %v392 = vpack.c.bf16 %v368, %v366
    %v393 = vpack.c.bf16 %v371, %v369
    %v394 = vpack.c.bf16 %v372, %v370
    %v395 = vpack.c.bf16 %v375, %v373
    %v396 = vpack.c.bf16 %v376, %v374
    %v397 = vpack.c.bf16 %v379, %v377
    %v398 = vpack.c.bf16 %v380, %v378
    %v399 = vpack.c.bf16 %v383, %v381
    %v400 = vpack.c.bf16 %v384, %v382
    %v401 = vld [vmem:[#allocation8] sm:$0xff]
    %v402 = vld [vmem:[#allocation8 + $0x8] sm:$0xff]
    %v403 = vld [vmem:[#allocation8 + $0x10] sm:$0xff]
    %v404 = vld [vmem:[#allocation8 + $0x18] sm:$0xff]
    %v405 = vld [vmem:[#allocation8 + $0x20] sm:$0xff]
    %v406 = vld [vmem:[#allocation8 + $0x28] sm:$0xff]
    %v407 = vld [vmem:[#allocation8 + $0x30] sm:$0xff]
    %v408 = vld [vmem:[#allocation8 + $0x38] sm:$0xff]
    %v409 = vld [vmem:[#allocation8 + $0x40] sm:$0xff]
    %v410 = vld [vmem:[#allocation8 + $0x48] sm:$0xff]
    %v411 = vld [vmem:[#allocation8 + $0x50] sm:$0xff]
    %v412 = vld [vmem:[#allocation8 + $0x58] sm:$0xff]
    %v413 = vld [vmem:[#allocation8 + $0x60] sm:$0xff]
    %v414 = vld [vmem:[#allocation8 + $0x68] sm:$0xff]
    %v415 = vld [vmem:[#allocation8 + $0x70] sm:$0xff]
    %v416 = vld [vmem:[#allocation8 + $0x78] sm:$0xff]
    %v417 = vld [vmem:[#allocation8 + $0x80] sm:$0xff]
    %v418 = vld [vmem:[#allocation8 + $0x88] sm:$0xff]
    %v419 = vld [vmem:[#allocation8 + $0x90] sm:$0xff]
    %v420 = vld [vmem:[#allocation8 + $0x98] sm:$0xff]
    %v421 = vld [vmem:[#allocation8 + $0xa0] sm:$0xff]
    %v422 = vld [vmem:[#allocation8 + $0xa8] sm:$0xff]
    %v423 = vld [vmem:[#allocation8 + $0xb0] sm:$0xff]
    %v424 = vld [vmem:[#allocation8 + $0xb8] sm:$0xff]
    %v425 = vld [vmem:[#allocation8 + $0xc0] sm:$0xff]
    %v426 = vld [vmem:[#allocation8 + $0xc8] sm:$0xff]
    %v427 = vld [vmem:[#allocation8 + $0xd0] sm:$0xff]
    %v428 = vld [vmem:[#allocation8 + $0xd8] sm:$0xff]
    %v429 = vld [vmem:[#allocation8 + $0xe0] sm:$0xff]
    %v430 = vld [vmem:[#allocation8 + $0xe8] sm:$0xff]
    %v431 = vld [vmem:[#allocation8 + $0xf0] sm:$0xff]
    %v432 = vld [vmem:[#allocation8 + $0xf8] sm:$0xff]
    %v433 = vld [vmem:[#allocation9] sm:$0x3]
    %v435 = vperm.slane %v433, 0
    %v436 = vperm.slane %v433, 1
    %v471 = vunpack.c.l.b16 %v401
    %v472 = vunpack.c.h.b16 %v401
    %v473 = vunpack.c.l.b16 %v402
    %v474 = vunpack.c.h.b16 %v402
    %v475 = vunpack.c.l.b16 %v403
    %v476 = vunpack.c.h.b16 %v403
    %v477 = vunpack.c.l.b16 %v404
    %v478 = vunpack.c.h.b16 %v404
    %v479 = vunpack.c.l.b16 %v405
    %v480 = vunpack.c.h.b16 %v405
    %v481 = vunpack.c.l.b16 %v406
    %v482 = vunpack.c.h.b16 %v406
    %v483 = vunpack.c.l.b16 %v407
    %v484 = vunpack.c.h.b16 %v407
    %v485 = vunpack.c.l.b16 %v408
    %v486 = vunpack.c.h.b16 %v408
    %v487 = vunpack.c.l.b16 %v409
    %v488 = vunpack.c.h.b16 %v409
    %v489 = vunpack.c.l.b16 %v410
    %v490 = vunpack.c.h.b16 %v410
    %v491 = vunpack.c.l.b16 %v411
    %v492 = vunpack.c.h.b16 %v411
    %v493 = vunpack.c.l.b16 %v412
    %v494 = vunpack.c.h.b16 %v412
    %v495 = vunpack.c.l.b16 %v413
    %v496 = vunpack.c.h.b16 %v413
    %v497 = vunpack.c.l.b16 %v414
    %v498 = vunpack.c.h.b16 %v414
    %v499 = vunpack.c.l.b16 %v415
    %v500 = vunpack.c.h.b16 %v415
    %v501 = vunpack.c.l.b16 %v416
    %v502 = vunpack.c.h.b16 %v416
    %v503 = vunpack.c.l.b16 %v417
    %v504 = vunpack.c.h.b16 %v417
    %v505 = vunpack.c.l.b16 %v418
    %v506 = vunpack.c.h.b16 %v418
    %v507 = vunpack.c.l.b16 %v419
    %v508 = vunpack.c.h.b16 %v419
    %v509 = vunpack.c.l.b16 %v420
    %v510 = vunpack.c.h.b16 %v420
    %v511 = vunpack.c.l.b16 %v421
    %v512 = vunpack.c.h.b16 %v421
    %v513 = vunpack.c.l.b16 %v422
    %v514 = vunpack.c.h.b16 %v422
    %v515 = vunpack.c.l.b16 %v423
    %v516 = vunpack.c.h.b16 %v423
    %v517 = vunpack.c.l.b16 %v424
    %v518 = vunpack.c.h.b16 %v424
    %v519 = vunpack.c.l.b16 %v425
    %v520 = vunpack.c.h.b16 %v425
    %v521 = vunpack.c.l.b16 %v426
    %v522 = vunpack.c.h.b16 %v426
    %v523 = vunpack.c.l.b16 %v427
    %v524 = vunpack.c.h.b16 %v427
    %v525 = vunpack.c.l.b16 %v428
    %v526 = vunpack.c.h.b16 %v428
    %v527 = vunpack.c.l.b16 %v429
    %v528 = vunpack.c.h.b16 %v429
    %v529 = vunpack.c.l.b16 %v430
    %v530 = vunpack.c.h.b16 %v430
    %v531 = vunpack.c.l.b16 %v431
    %v532 = vunpack.c.h.b16 %v431
    %v533 = vunpack.c.l.b16 %v432
    %v534 = vunpack.c.h.b16 %v432
    %v535 = vpack.c.b16 %v473, %v471
    %v536 = vpack.c.b16 %v474, %v472
    %v537 = vpack.c.b16 %v477, %v475
    %v538 = vpack.c.b16 %v478, %v476
    %v539 = vpack.c.b16 %v481, %v479
    %v540 = vpack.c.b16 %v482, %v480
    %v541 = vpack.c.b16 %v485, %v483
    %v542 = vpack.c.b16 %v486, %v484
    %v543 = vpack.c.b16 %v489, %v487
    %v544 = vpack.c.b16 %v490, %v488
    %v545 = vpack.c.b16 %v493, %v491
    %v546 = vpack.c.b16 %v494, %v492
    %v547 = vpack.c.b16 %v497, %v495
    %v548 = vpack.c.b16 %v498, %v496
    %v549 = vpack.c.b16 %v501, %v499
    %v550 = vpack.c.b16 %v502, %v500
    %v551 = vpack.c.b16 %v505, %v503
    %v552 = vpack.c.b16 %v506, %v504
    %v553 = vpack.c.b16 %v509, %v507
    %v554 = vpack.c.b16 %v510, %v508
    %v555 = vpack.c.b16 %v513, %v511
    %v556 = vpack.c.b16 %v514, %v512
    %v557 = vpack.c.b16 %v517, %v515
    %v558 = vpack.c.b16 %v518, %v516
    %v559 = vpack.c.b16 %v521, %v519
    %v560 = vpack.c.b16 %v522, %v520
    %v561 = vpack.c.b16 %v525, %v523
    %v562 = vpack.c.b16 %v526, %v524
    %v563 = vpack.c.b16 %v529, %v527
    %v564 = vpack.c.b16 %v530, %v528
    %v565 = vpack.c.b16 %v533, %v531
    %v566 = vpack.c.b16 %v534, %v532
    %599 = vmatpush.bf16.msra.mxu0 %v549
    %600 = vmatpush.bf16.msra.mxu0 %v547
    %601 = vmatpush.bf16.msra.mxu0 %v545
    %602 = vmatpush.bf16.msra.mxu0 %v543
    %603 = vmatpush.bf16.msra.mxu0 %v541
    %604 = vmatpush.bf16.msra.mxu0 %v539
    %605 = vmatpush.bf16.msra.mxu0 %v537
    %606 = vmatpush.bf16.msra.mxu0 %v535
    %607 = vmatmul.bf16.gmra.mxu0 %v385
    %v608 = vpop.f32.mrf.mxu0
    %v609 = vadd.f32 %v435, %v608
    %v610 = vpop.f32.mrf.mxu0
    %v611 = vadd.f32 %v435, %v610
    %612 = vmatmul.bf16.gmra.mxu0 %v387
    %v613 = vpop.f32.mrf.mxu0
    %v614 = vadd.f32 %v435, %v613
    %v615 = vpop.f32.mrf.mxu0
    %v616 = vadd.f32 %v435, %v615
    %617 = vmatmul.bf16.gmra.mxu0 %v389
    %v618 = vpop.f32.mrf.mxu0
    %v619 = vadd.f32 %v435, %v618
    %v620 = vpop.f32.mrf.mxu0
    %v621 = vadd.f32 %v435, %v620
    %622 = vmatmul.bf16.gmra.mxu0 %v391
    %v623 = vpop.f32.mrf.mxu0
    %v624 = vadd.f32 %v435, %v623
    %v625 = vpop.f32.mrf.mxu0
    %v626 = vadd.f32 %v435, %v625
    %627 = vmatmul.bf16.gmra.mxu0 %v393
    %v628 = vpop.f32.mrf.mxu0
    %v629 = vadd.f32 %v435, %v628
    %v630 = vpop.f32.mrf.mxu0
    %v631 = vadd.f32 %v435, %v630
    %632 = vmatmul.bf16.gmra.mxu0 %v395
    %v633 = vpop.f32.mrf.mxu0
    %v634 = vadd.f32 %v435, %v633
    %v635 = vpop.f32.mrf.mxu0
    %v636 = vadd.f32 %v435, %v635
    %637 = vmatmul.bf16.gmra.mxu0 %v397
    %v638 = vpop.f32.mrf.mxu0
    %v639 = vadd.f32 %v435, %v638
    %v640 = vpop.f32.mrf.mxu0
    %v641 = vadd.f32 %v435, %v640
    %642 = vmatmul.bf16.gmra.mxu0 %v399
    %v643 = vpop.f32.mrf.mxu0
    %v644 = vadd.f32 %v435, %v643
    %v645 = vpop.f32.mrf.mxu0
    %v646 = vadd.f32 %v435, %v645
    %647 = vdwg.mxu0
    %648 = vmatpush.bf16.msra.mxu0 %v565
    %649 = vmatpush.bf16.msra.mxu0 %v563
    %650 = vmatpush.bf16.msra.mxu0 %v561
    %651 = vmatpush.bf16.msra.mxu0 %v559
    %652 = vmatpush.bf16.msra.mxu0 %v557
    %653 = vmatpush.bf16.msra.mxu0 %v555
    %654 = vmatpush.bf16.msra.mxu0 %v553
    %655 = vmatpush.bf16.msra.mxu0 %v551
    %656 = vmatmul.bf16.gmra.mxu0 %v386
    %v657 = vpop.f32.mrf.mxu0
    %v658 = vadd.f32 %v609, %v657
    %v659 = vpop.f32.mrf.mxu0
    %v660 = vadd.f32 %v611, %v659
    %661 = vmatmul.bf16.gmra.mxu0 %v388
    %v662 = vpop.f32.mrf.mxu0
    %v663 = vadd.f32 %v614, %v662
    %v664 = vpop.f32.mrf.mxu0
    %v665 = vadd.f32 %v616, %v664
    %666 = vmatmul.bf16.gmra.mxu0 %v390
    %v667 = vpop.f32.mrf.mxu0
    %v668 = vadd.f32 %v619, %v667
    %v669 = vpop.f32.mrf.mxu0
    %v670 = vadd.f32 %v621, %v669
    %671 = vmatmul.bf16.gmra.mxu0 %v392
    %v672 = vpop.f32.mrf.mxu0
    %v673 = vadd.f32 %v624, %v672
    %v674 = vpop.f32.mrf.mxu0
    %v675 = vadd.f32 %v626, %v674
    %676 = vmatmul.bf16.gmra.mxu0 %v394
    %v677 = vpop.f32.mrf.mxu0
    %v678 = vadd.f32 %v629, %v677
    %v679 = vpop.f32.mrf.mxu0
    %v680 = vadd.f32 %v631, %v679
    %681 = vmatmul.bf16.gmra.mxu0 %v396
    %v682 = vpop.f32.mrf.mxu0
    %v683 = vadd.f32 %v634, %v682
    %v684 = vpop.f32.mrf.mxu0
    %v685 = vadd.f32 %v636, %v684
    %686 = vmatmul.bf16.gmra.mxu0 %v398
    %v687 = vpop.f32.mrf.mxu0
    %v688 = vadd.f32 %v639, %v687
    %v689 = vpop.f32.mrf.mxu0
    %v690 = vadd.f32 %v641, %v689
    %691 = vmatmul.bf16.gmra.mxu0 %v400
    %v692 = vpop.f32.mrf.mxu0
    %v693 = vadd.f32 %v644, %v692
    %v694 = vpop.f32.mrf.mxu0
    %v695 = vadd.f32 %v646, %v694
    %696 = vdwg.mxu0
    %697 = vmatpush.bf16.msra.mxu0 %v550
    %698 = vmatpush.bf16.msra.mxu0 %v548
    %699 = vmatpush.bf16.msra.mxu0 %v546
    %700 = vmatpush.bf16.msra.mxu0 %v544
    %701 = vmatpush.bf16.msra.mxu0 %v542
    %702 = vmatpush.bf16.msra.mxu0 %v540
    %703 = vmatpush.bf16.msra.mxu0 %v538
    %704 = vmatpush.bf16.msra.mxu0 %v536
    %705 = vmatmul.bf16.gmra.mxu0 %v385
    %v706 = vpop.f32.mrf.mxu0
    %v707 = vadd.f32 %v436, %v706
    %v708 = vpop.f32.mrf.mxu0
    %v709 = vadd.f32 %v436, %v708
    %710 = vmatmul.bf16.gmra.mxu0 %v387
    %v711 = vpop.f32.mrf.mxu0
    %v712 = vadd.f32 %v436, %v711
    %v713 = vpop.f32.mrf.mxu0
    %v714 = vadd.f32 %v436, %v713
    %715 = vmatmul.bf16.gmra.mxu0 %v389
    %v716 = vpop.f32.mrf.mxu0
    %v717 = vadd.f32 %v436, %v716
    %v718 = vpop.f32.mrf.mxu0
    %v719 = vadd.f32 %v436, %v718
    %720 = vmatmul.bf16.gmra.mxu0 %v391
    %v721 = vpop.f32.mrf.mxu0
    %v722 = vadd.f32 %v436, %v721
    %v723 = vpop.f32.mrf.mxu0
    %v724 = vadd.f32 %v436, %v723
    %725 = vmatmul.bf16.gmra.mxu0 %v393
    %v726 = vpop.f32.mrf.mxu0
    %v727 = vadd.f32 %v436, %v726
    %v728 = vpop.f32.mrf.mxu0
    %v729 = vadd.f32 %v436, %v728
    %730 = vmatmul.bf16.gmra.mxu0 %v395
    %v731 = vpop.f32.mrf.mxu0
    %v732 = vadd.f32 %v436, %v731
    %v733 = vpop.f32.mrf.mxu0
    %v734 = vadd.f32 %v436, %v733
    %735 = vmatmul.bf16.gmra.mxu0 %v397
    %v736 = vpop.f32.mrf.mxu0
    %v737 = vadd.f32 %v436, %v736
    %v738 = vpop.f32.mrf.mxu0
    %v739 = vadd.f32 %v436, %v738
    %740 = vmatmul.bf16.gmra.mxu0 %v399
    %v741 = vpop.f32.mrf.mxu0
    %v742 = vadd.f32 %v436, %v741
    %v743 = vpop.f32.mrf.mxu0
    %v744 = vadd.f32 %v436, %v743
    %745 = vdwg.mxu0
    %746 = vmatpush.bf16.msra.mxu0 %v566
    %747 = vmatpush.bf16.msra.mxu0 %v564
    %748 = vmatpush.bf16.msra.mxu0 %v562
    %749 = vmatpush.bf16.msra.mxu0 %v560
    %750 = vmatpush.bf16.msra.mxu0 %v558
    %751 = vmatpush.bf16.msra.mxu0 %v556
    %752 = vmatpush.bf16.msra.mxu0 %v554
    %753 = vmatpush.bf16.msra.mxu0 %v552
    %754 = vmatmul.bf16.gmra.mxu0 %v386
    %v755 = vpop.f32.mrf.mxu0
    %v756 = vadd.f32 %v707, %v755
    %v757 = vpop.f32.mrf.mxu0
    %v758 = vadd.f32 %v709, %v757
    %759 = vmatmul.bf16.gmra.mxu0 %v388
    %v760 = vpop.f32.mrf.mxu0
    %v761 = vadd.f32 %v712, %v760
    %v762 = vpop.f32.mrf.mxu0
    %v763 = vadd.f32 %v714, %v762
    %764 = vmatmul.bf16.gmra.mxu0 %v390
    %v765 = vpop.f32.mrf.mxu0
    %v766 = vadd.f32 %v717, %v765
    %v767 = vpop.f32.mrf.mxu0
    %v768 = vadd.f32 %v719, %v767
    %769 = vmatmul.bf16.gmra.mxu0 %v392
    %v770 = vpop.f32.mrf.mxu0
    %v771 = vadd.f32 %v722, %v770
    %v772 = vpop.f32.mrf.mxu0
    %v773 = vadd.f32 %v724, %v772
    %774 = vmatmul.bf16.gmra.mxu0 %v394
    %v775 = vpop.f32.mrf.mxu0
    %v776 = vadd.f32 %v727, %v775
    %v777 = vpop.f32.mrf.mxu0
    %v778 = vadd.f32 %v729, %v777
    %779 = vmatmul.bf16.gmra.mxu0 %v396
    %v780 = vpop.f32.mrf.mxu0
    %v781 = vadd.f32 %v732, %v780
    %v782 = vpop.f32.mrf.mxu0
    %v783 = vadd.f32 %v734, %v782
    %784 = vmatmul.bf16.gmra.mxu0 %v398
    %v785 = vpop.f32.mrf.mxu0
    %v786 = vadd.f32 %v737, %v785
    %v787 = vpop.f32.mrf.mxu0
    %v788 = vadd.f32 %v739, %v787
    %789 = vmatmul.bf16.gmra.mxu0 %v400
    %v790 = vpop.f32.mrf.mxu0
    %v791 = vadd.f32 %v742, %v790
    %v792 = vpop.f32.mrf.mxu0
    %v793 = vadd.f32 %v744, %v792
    %794 = vdwg.mxu0
    %v795 = vmax.f32 %v658, 0.0
    %v796 = vmax.f32 %v756, 0.0
    %v797 = vmax.f32 %v660, 0.0
    %v798 = vmax.f32 %v758, 0.0
    %v799 = vmax.f32 %v663, 0.0
    %v800 = vmax.f32 %v761, 0.0
    %v801 = vmax.f32 %v665, 0.0
    %v802 = vmax.f32 %v763, 0.0
    %v803 = vmax.f32 %v668, 0.0
    %v804 = vmax.f32 %v766, 0.0
    %v805 = vmax.f32 %v670, 0.0
    %v806 = vmax.f32 %v768, 0.0
    %v807 = vmax.f32 %v673, 0.0
    %v808 = vmax.f32 %v771, 0.0
    %v809 = vmax.f32 %v675, 0.0
    %v810 = vmax.f32 %v773, 0.0
    %v811 = vmax.f32 %v678, 0.0
    %v812 = vmax.f32 %v776, 0.0
    %v813 = vmax.f32 %v680, 0.0
    %v814 = vmax.f32 %v778, 0.0
    %v815 = vmax.f32 %v683, 0.0
    %v816 = vmax.f32 %v781, 0.0
    %v817 = vmax.f32 %v685, 0.0
    %v818 = vmax.f32 %v783, 0.0
    %v819 = vmax.f32 %v688, 0.0
    %v820 = vmax.f32 %v786, 0.0
    %v821 = vmax.f32 %v690, 0.0
    %v822 = vmax.f32 %v788, 0.0
    %v823 = vmax.f32 %v693, 0.0
    %v824 = vmax.f32 %v791, 0.0
    %v825 = vmax.f32 %v695, 0.0
    %v826 = vmax.f32 %v793, 0.0
    %v827 = vld [vmem:[%s5] sm:$0xf]
    %v828 = vpack.c.bf16 %v797, %v795
    %v829 = vpack.c.bf16 %v798, %v796
    %v830 = vpack.c.bf16 %v801, %v799
    %v831 = vpack.c.bf16 %v802, %v800
    %v832 = vpack.c.bf16 %v805, %v803
    %v833 = vpack.c.bf16 %v806, %v804
    %v834 = vpack.c.bf16 %v809, %v807
    %v835 = vpack.c.bf16 %v810, %v808
    %v836 = vpack.c.bf16 %v813, %v811
    %v837 = vpack.c.bf16 %v814, %v812
    %v838 = vpack.c.bf16 %v817, %v815
    %v839 = vpack.c.bf16 %v818, %v816
    %v840 = vpack.c.bf16 %v821, %v819
    %v841 = vpack.c.bf16 %v822, %v820
    %v842 = vpack.c.bf16 %v825, %v823
    %v843 = vpack.c.bf16 %v826, %v824
    %s844 = sld [smem:[#allocation2]]
    %v845 = vstv %s844
    %847 = vst [vmem:[#allocation1] ss:$4 sm:$0xff] %v827
    %v848 = vld.sshfl [vmem:[#allocation1] sm:$0xff pattern:$0x73625140]
    %v849 = vld.sshfl [vmem:[#allocation1 + $0x8] sm:$0xff pattern:$0x73625140]
    %852 = vmatpush.bf16.xpose.msra.mxu0 %v842
    %853 = vmatpush.bf16.xpose.msra.mxu0 %v840
    %854 = vmatpush.bf16.xpose.msra.mxu0 %v838
    %855 = vmatpush.bf16.xpose.msra.mxu0 %v836
    %856 = vmatpush.bf16.xpose.msra.mxu0 %v834
    %857 = vmatpush.bf16.xpose.msra.mxu0 %v832
    %858 = vmatpush.bf16.xpose.msra.mxu0 %v830
    %859 = vmatpush.bf16.xpose.msra.mxu0 %v828
    %860 = vmatmul.bf16.gmra.mxu0 %v848
    %v861 = vpop.f32.mrf.mxu0
    %v862 = vadd.f32 %v845, %v861
    %v863 = vpop.f32.mrf.mxu0
    %864 = vdwg.mxu0
    %865 = vmatpush.bf16.xpose.msra.mxu0 %v843
    %866 = vmatpush.bf16.xpose.msra.mxu0 %v841
    %867 = vmatpush.bf16.xpose.msra.mxu0 %v839
    %868 = vmatpush.bf16.xpose.msra.mxu0 %v837
    %869 = vmatpush.bf16.xpose.msra.mxu0 %v835
    %870 = vmatpush.bf16.xpose.msra.mxu0 %v833
    %871 = vmatpush.bf16.xpose.msra.mxu0 %v831
    %872 = vmatpush.bf16.xpose.msra.mxu0 %v829
    %873 = vmatmul.bf16.gmra.mxu0 %v849
    %v874 = vpop.f32.mrf.mxu0
    %v875 = vadd.f32 %v862, %v874
    %v876 = vpop.f32.mrf.mxu0
    %877 = vdwg.mxu0
    %878 = vst [vmem:[#allocation11] sm:$0xf] %v875
    // Predicated region
    $region46: #{tpu_custom_call.1} parent=1 // pred_check
      _
    $region47: #{tpu_custom_call.1} parent=1 // pred_check_branch
      %880 = sbr.rel (0) target = $region49
    $region48: #{tpu_custom_call.1} parent=1 // pred_region
      %882 = vsyncadd [#allocation5], 0
      %s884 = sshll.u32 [#allocation11], 4
      %s885 = int_to_ptr.vmem [resolvable:$true] %s884
      %s886 = sshll.u32 %s7, 4
      %s887 = int_to_ptr.hbm [resolvable:$true] %s886
      %889 = dma.vmem_to_hbm [thread:$0]  %s885, 64, %s887, [#allocation5]
    $region49: #{tpu_custom_call.1} parent=1 // pred_fallthru
      _
    // Predicated region
    $region50: #{tpu_custom_call.1} parent=1 // pred_check
      _
    $region51: #{tpu_custom_call.1} parent=1 // pred_check_branch
      %891 = sbr.rel (0) target = $region53
    $region52: #{tpu_custom_call.1} parent=1 // pred_region
      %893 = dma.done [#allocation5], 64
    $region53: #{tpu_custom_call.1} parent=1 // pred_fallthru
      _
    %894 = vsyncpa [#allocation4], 1
    %895 = vsyncpa [#allocation7], 1
    %896 = vsyncpa [#allocation10], 1
    %897 = vsyncpa [#allocation5], 1

</llo_original>
